<compile_context>
chip_gen: v7x
topology: tpu7x:2x2x1
jax: 0.10.0
libtpu: 0.0.40
codegen_flags: <defaults>
</compile_context>

<pallas_src>
import functools

import jax
import jax.numpy as jnp
from jax.experimental import pallas as pl
from jax.experimental.pallas import tpu as pltpu

_LANE = 128      # lane width (last dim)
_SUBLANE = 8     # sublane width (second-to-last dim)


def _round_up(x, m):
    return ((x + m - 1) // m) * m


def _mlp_fused_kernel(x_ref, w_ref, b_ref, o_ref, *,
                      num_layers, activation, gelu_approx):
    """Full MLP forward on one batch tile.

    x_ref : [TB, D]      (bf16)  streamed batch tile
    w_ref : [L, D, D]    (bf16)  stacked, BN-folded, zero-padded weights
    b_ref : [L, 1, D]    (f32)   stacked, BN-folded, zero-padded biases
    o_ref : [TB, D]      (f32)   logits (lane-padded)

    Zero padding is exact through matmul / bias / activation (act(0) == 0),
    so padded lanes stay zero layer-to-layer.
    """
    h = x_ref[...]                                  # bf16 into the MXU
    for li in range(num_layers):                    # static loop -> unrolled
        acc = jnp.dot(h, w_ref[li],
                      preferred_element_type=jnp.float32) + b_ref[li]
        if li < num_layers - 1:
            if activation == "gelu":
                # tanh-approx GELU runs on the (idle) EUP; exact erf stays on
                # the VALU polynomial path.
                acc = jax.nn.gelu(acc, approximate=gelu_approx)
            elif activation == "relu":
                acc = jnp.maximum(acc, 0.0)
            elif activation in ("silu", "swish"):
                acc = acc * jax.nn.sigmoid(acc)
            # else: identity
            h = acc.astype(x_ref.dtype)             # back to bf16 for next MXU op
        else:
            h = acc                                 # keep final logits in f32
    o_ref[...] = h.astype(o_ref.dtype)


def init_classification_head(key, input_dim, hidden_dims, output_dim,
                             use_batchnorm=True, activation="gelu",
                             param_dtype=jnp.bfloat16, gelu_approximate=True):
    """Deterministic synthetic params (same shapes as the PyTorch module).

    Returns the raw (unfolded, f32) params for reference checking and the
    BN-folded, lane-padded, stacked params the fused kernel consumes.
    """
    eps = 1e-5
    dims = list(hidden_dims) + [output_dim]
    num_layers = len(dims)
    # Common padded feature width: every layer's in/out dim fits inside D.
    D = _round_up(max([input_dim] + dims), _LANE)

    w_stack = jnp.zeros((num_layers, D, D), jnp.float32)
    b_stack = jnp.zeros((num_layers, 1, D), jnp.float32)
    raw_layers = []
    prev = input_dim
    for li, d in enumerate(dims):
        key, kw, kb = jax.random.split(key, 3)
        w = jax.random.normal(kw, (prev, d), dtype=jnp.float32) * 0.02
        b = jax.random.normal(kb, (d,), dtype=jnp.float32) * 0.01
        is_hidden = li < len(hidden_dims)
        if is_hidden and use_batchnorm:
            # PyTorch BatchNorm1d defaults (eval): gamma=1, beta=0, mean=0, var=1
            gamma = jnp.ones((d,), jnp.float32)
            beta = jnp.zeros((d,), jnp.float32)
            running_mean = jnp.zeros((d,), jnp.float32)
            running_var = jnp.ones((d,), jnp.float32)
            scale = gamma / jnp.sqrt(running_var + eps)
            shift = beta - running_mean * scale
        else:
            scale = jnp.ones((d,), jnp.float32)
            shift = jnp.zeros((d,), jnp.float32)
        raw_layers.append(dict(w=w, b=b, scale=scale, shift=shift,
                               is_hidden=is_hidden))

        # Fold eval-mode BN (scale/shift) into the linear layer (exact).
        w_folded = w * scale[None, :]
        b_folded = b * scale + shift

        # Place into the common stacked, zero-padded operands.
        w_stack = w_stack.at[li, :prev, :d].set(w_folded)
        b_stack = b_stack.at[li, 0, :d].set(b_folded)
        prev = d

    return dict(raw=raw_layers,
                w_stack=w_stack.astype(param_dtype),   # bf16 into the MXU
                b_stack=b_stack,                       # biases added in f32
                activation=activation,
                gelu_approximate=gelu_approximate,
                num_layers=num_layers,
                input_dim=input_dim,
                output_dim=output_dim,
                feature_pad=D)


def classification_head_forward(x, head, *, max_batch_tile=512,
                                slice_output=True):
    """Fused pallas_call for the whole head.  x: [batch, input_dim].

    With slice_output=False the lane-padded [Bp, D] logits are returned so a
    downstream consumer can fuse the slice (keeps the kernel's stores
    unmasked / lane-dense).
    """
    B, Din = x.shape
    assert Din == head["input_dim"]
    D = head["feature_pad"]
    L = head["num_layers"]
    w_stack = head["w_stack"]
    b_stack = head["b_stack"]

    # Batch tile: multiple of 8, capped (per-step overhead amortisation);
    # pad the batch so it divides evenly.
    TB = min(_round_up(max(B, _SUBLANE), _SUBLANE), max_batch_tile)
    Bp = _round_up(B, TB)

    # Zero-pad the activation once in the wrapper and cast to the weight
    # dtype (mirrors the module's `x = x.to(weight.dtype)`).
    x_pad = jnp.zeros((Bp, D), w_stack.dtype).at[:B, :Din].set(
        x.astype(w_stack.dtype))

    kernel = functools.partial(_mlp_fused_kernel,
                               num_layers=L,
                               activation=head["activation"],
                               gelu_approx=head["gelu_approximate"])

    flops = 2 * Bp * D * D * L
    transcendentals = 0 if head["activation"] == "relu" else Bp * D * max(L - 1, 0)
    bytes_accessed = (x_pad.size * x_pad.dtype.itemsize
                      + w_stack.size * w_stack.dtype.itemsize
                      + b_stack.size * b_stack.dtype.itemsize
                      + Bp * D * 4)

    out_pad = pl.pallas_call(
        kernel,
        out_shape=jax.ShapeDtypeStruct((Bp, D), jnp.float32),
        grid=(Bp // TB,),
        in_specs=[
            pl.BlockSpec((TB, D), lambda i: (i, 0)),        # streamed batch tiles
            pl.BlockSpec((L, D, D), lambda i: (0, 0, 0)),   # resident weights
            pl.BlockSpec((L, 1, D), lambda i: (0, 0, 0)),   # resident biases
        ],
        out_specs=pl.BlockSpec((TB, D), lambda i: (i, 0)),
        compiler_params=pltpu.CompilerParams(
            dimension_semantics=("parallel",)),
        cost_estimate=pl.CostEstimate(flops=flops,
                                      transcendentals=transcendentals,
                                      bytes_accessed=bytes_accessed),
    )(x_pad, w_stack, b_stack)

    if slice_output:
        return out_pad[:B, :head["output_dim"]]
    return out_pad


def _reference_forward(x, head):
    """Pure-JAX f32 reference (unfolded params) for a sanity check."""
    h = x
    act = head["activation"]
    approx = head["gelu_approximate"]
    for layer in head["raw"]:
        h = h @ layer["w"] + layer["b"]
        h = h * layer["scale"] + layer["shift"]
        if layer["is_hidden"]:
            if act == "gelu":
                h = jax.nn.gelu(h, approximate=approx)
            elif act == "relu":
                h = jnp.maximum(h, 0.0)
            elif act in ("silu", "swish"):
                h = h * jax.nn.sigmoid(h)
    return h


if __name__ == "__main__":
    # Small shapes consistent with the module: x is [batch_size, input_dim]
    batch = 8
    input_dim = 32
    hidden_dims = [64, 48]
    output_dim = 10

    key = jax.random.PRNGKey(0)
    key, kx = jax.random.split(key)
    x = jax.random.normal(kx, (batch, input_dim), dtype=jnp.float32)

    # TODO(synk): set gelu_approximate=False / param_dtype=jnp.float32 to
    # bit-match nn.GELU()'s exact-erf + fp32 numerics (slower MXU/VALU path).
    head = init_classification_head(key, input_dim, hidden_dims, output_dim,
                                    use_batchnorm=True, activation="gelu",
                                    param_dtype=jnp.bfloat16,
                                    gelu_approximate=True)

    logits = classification_head_forward(x, head)
    logits = jax.block_until_ready(logits)

    ref = _reference_forward(x, head)
    assert logits.shape == (batch, output_dim), logits.shape
    # bf16 MXU operands -> loosened tolerance vs the f32 reference.
    assert jnp.allclose(logits, ref, atol=5e-3, rtol=1e-2), (
        "mismatch vs reference; max abs diff = "
        f"{float(jnp.max(jnp.abs(logits - ref)))}")

    print("KERNEL_OK")
</pallas_src>

<mosaic_0001>
module attributes {stable_mosaic.version = 11 : i64} {
  func.func @_mlp_fused_kernel(%arg0: i32, %arg1: memref<8x128xbf16, #tpu.memory_space<vmem>>, %arg2: memref<3x128x128xbf16, #tpu.memory_space<vmem>>, %arg3: memref<3x1x128xf32, #tpu.memory_space<vmem>>, %arg4: memref<8x128xf32, #tpu.memory_space<vmem>>) attributes {dimension_semantics = [#tpu.dimension_semantics<parallel>], iteration_bounds = array<i64: 1>, scalar_prefetch = 0 : i64, scratch_operands = 0 : i64, tpu.core_type = #tpu.core_type<tc>, window_params = [{transform_indices = @transform_0, window_bounds = array<i64: 8, 128>}, {pipeline_mode = #tpu.pipeline_mode<synchronous>, transform_indices = @transform_1, window_bounds = array<i64: 3, 128, 128>}, {pipeline_mode = #tpu.pipeline_mode<synchronous>, transform_indices = @transform_2, window_bounds = array<i64: 3, 1, 128>}, {transform_indices = @transform_3, window_bounds = array<i64: 8, 128>}]} {
    %c0 = arith.constant 0 : index
    %c0_0 = arith.constant 0 : index
    %0 = vector.load %arg1[%c0, %c0_0] : memref<8x128xbf16, #tpu.memory_space<vmem>>, vector<8x128xbf16>
    %c0_1 = arith.constant 0 : index
    %c0_2 = arith.constant 0 : index
    %c0_3 = arith.constant 0 : index
    %1 = vector.load %arg2[%c0_1, %c0_2, %c0_3] : memref<3x128x128xbf16, #tpu.memory_space<vmem>>, vector<1x128x128xbf16>
    %2 = vector.shape_cast %1 : vector<1x128x128xbf16> to vector<128x128xbf16>
    %cst = arith.constant dense<0.000000e+00> : vector<8x128xf32>
    %3 = tpu.matmul %0, %2, %cst {dimension_numbers = #tpu.dot_dimension_numbers<[1], [0], [0], [1], [0, 0, 1, 1], [], []>} : vector<8x128xbf16>, vector<128x128xbf16>, vector<8x128xf32> -> vector<8x128xf32>
    %c0_4 = arith.constant 0 : index
    %c0_5 = arith.constant 0 : index
    %c0_6 = arith.constant 0 : index
    %4 = vector.load %arg3[%c0_4, %c0_5, %c0_6] : memref<3x1x128xf32, #tpu.memory_space<vmem>>, vector<1x1x128xf32>
    %5 = vector.shape_cast %4 : vector<1x1x128xf32> to vector<1x128xf32>
    %6 = vector.broadcast %5 : vector<1x128xf32> to vector<8x128xf32>
    %7 = arith.addf %3, %6 : vector<8x128xf32>
    %8 = arith.mulf %7, %7 : vector<8x128xf32>
    %9 = arith.mulf %7, %8 : vector<8x128xf32>
    %cst_7 = arith.constant 4.471500e-02 : f32
    %10 = vector.broadcast %cst_7 : f32 to vector<8x128xf32>
    %11 = arith.mulf %10, %9 : vector<8x128xf32>
    %12 = arith.addf %7, %11 : vector<8x128xf32>
    %cst_8 = arith.constant 0.797884583 : f32
    %13 = vector.broadcast %cst_8 : f32 to vector<8x128xf32>
    %14 = arith.mulf %13, %12 : vector<8x128xf32>
    %15 = math.tanh %14 : vector<8x128xf32>
    %cst_9 = arith.constant 1.000000e+00 : f32
    %16 = vector.broadcast %cst_9 : f32 to vector<8x128xf32>
    %17 = arith.addf %16, %15 : vector<8x128xf32>
    %cst_10 = arith.constant 5.000000e-01 : f32
    %18 = vector.broadcast %cst_10 : f32 to vector<8x128xf32>
    %19 = arith.mulf %18, %17 : vector<8x128xf32>
    %20 = arith.mulf %7, %19 : vector<8x128xf32>
    %21 = arith.truncf %20 : vector<8x128xf32> to vector<8x128xbf16>
    %c1 = arith.constant 1 : index
    %c0_11 = arith.constant 0 : index
    %c0_12 = arith.constant 0 : index
    %22 = vector.load %arg2[%c1, %c0_11, %c0_12] : memref<3x128x128xbf16, #tpu.memory_space<vmem>>, vector<1x128x128xbf16>
    %23 = vector.shape_cast %22 : vector<1x128x128xbf16> to vector<128x128xbf16>
    %cst_13 = arith.constant dense<0.000000e+00> : vector<8x128xf32>
    %24 = tpu.matmul %21, %23, %cst_13 {dimension_numbers = #tpu.dot_dimension_numbers<[1], [0], [0], [1], [0, 0, 1, 1], [], []>} : vector<8x128xbf16>, vector<128x128xbf16>, vector<8x128xf32> -> vector<8x128xf32>
    %c1_14 = arith.constant 1 : index
    %c0_15 = arith.constant 0 : index
    %c0_16 = arith.constant 0 : index
    %25 = vector.load %arg3[%c1_14, %c0_15, %c0_16] : memref<3x1x128xf32, #tpu.memory_space<vmem>>, vector<1x1x128xf32>
    %26 = vector.shape_cast %25 : vector<1x1x128xf32> to vector<1x128xf32>
    %27 = vector.broadcast %26 : vector<1x128xf32> to vector<8x128xf32>
    %28 = arith.addf %24, %27 : vector<8x128xf32>
    %29 = arith.mulf %28, %28 : vector<8x128xf32>
    %30 = arith.mulf %28, %29 : vector<8x128xf32>
    %cst_17 = arith.constant 4.471500e-02 : f32
    %31 = vector.broadcast %cst_17 : f32 to vector<8x128xf32>
    %32 = arith.mulf %31, %30 : vector<8x128xf32>
    %33 = arith.addf %28, %32 : vector<8x128xf32>
    %cst_18 = arith.constant 0.797884583 : f32
    %34 = vector.broadcast %cst_18 : f32 to vector<8x128xf32>
    %35 = arith.mulf %34, %33 : vector<8x128xf32>
    %36 = math.tanh %35 : vector<8x128xf32>
    %cst_19 = arith.constant 1.000000e+00 : f32
    %37 = vector.broadcast %cst_19 : f32 to vector<8x128xf32>
    %38 = arith.addf %37, %36 : vector<8x128xf32>
    %cst_20 = arith.constant 5.000000e-01 : f32
    %39 = vector.broadcast %cst_20 : f32 to vector<8x128xf32>
    %40 = arith.mulf %39, %38 : vector<8x128xf32>
    %41 = arith.mulf %28, %40 : vector<8x128xf32>
    %42 = arith.truncf %41 : vector<8x128xf32> to vector<8x128xbf16>
    %c2 = arith.constant 2 : index
    %c0_21 = arith.constant 0 : index
    %c0_22 = arith.constant 0 : index
    %43 = vector.load %arg2[%c2, %c0_21, %c0_22] : memref<3x128x128xbf16, #tpu.memory_space<vmem>>, vector<1x128x128xbf16>
    %44 = vector.shape_cast %43 : vector<1x128x128xbf16> to vector<128x128xbf16>
    %cst_23 = arith.constant dense<0.000000e+00> : vector<8x128xf32>
    %45 = tpu.matmul %42, %44, %cst_23 {dimension_numbers = #tpu.dot_dimension_numbers<[1], [0], [0], [1], [0, 0, 1, 1], [], []>} : vector<8x128xbf16>, vector<128x128xbf16>, vector<8x128xf32> -> vector<8x128xf32>
    %c2_24 = arith.constant 2 : index
    %c0_25 = arith.constant 0 : index
    %c0_26 = arith.constant 0 : index
    %46 = vector.load %arg3[%c2_24, %c0_25, %c0_26] : memref<3x1x128xf32, #tpu.memory_space<vmem>>, vector<1x1x128xf32>
    %47 = vector.shape_cast %46 : vector<1x1x128xf32> to vector<1x128xf32>
    %48 = vector.broadcast %47 : vector<1x128xf32> to vector<8x128xf32>
    %49 = arith.addf %45, %48 : vector<8x128xf32>
    %c0_27 = arith.constant 0 : index
    %c0_28 = arith.constant 0 : index
    %50 = vector.load %arg4[%c0_27, %c0_28] : memref<8x128xf32, #tpu.memory_space<vmem>>, vector<8x128xf32>
    tpu.vector_store %arg4[%c0_27, %c0_28], %49 {strides = array<i32>} : memref<8x128xf32, #tpu.memory_space<vmem>>, vector<8x128xf32>,
    return
  }
  func.func @transform_0(%arg0: i32) -> (i32, i32) {
    %c0_i32 = arith.constant 0 : i32
    %c0_i32_0 = arith.constant 0 : i32
    return %arg0, %c0_i32 : i32, i32
  }
  func.func @transform_1(%arg0: i32) -> (i32, i32, i32) {
    %c0_i32 = arith.constant 0 : i32
    %c0_i32_0 = arith.constant 0 : i32
    %c0_i32_1 = arith.constant 0 : i32
    %c0_i32_2 = arith.constant 0 : i32
    return %c0_i32, %c0_i32_0, %c0_i32_1 : i32, i32, i32
  }
  func.func @transform_2(%arg0: i32) -> (i32, i32, i32) {
    %c0_i32 = arith.constant 0 : i32
    %c0_i32_0 = arith.constant 0 : i32
    %c0_i32_1 = arith.constant 0 : i32
    %c0_i32_2 = arith.constant 0 : i32
    return %c0_i32, %c0_i32_0, %c0_i32_1 : i32, i32, i32
  }
  func.func @transform_3(%arg0: i32) -> (i32, i32) {
    %c0_i32 = arith.constant 0 : i32
    %c0_i32_0 = arith.constant 0 : i32
    return %arg0, %c0_i32 : i32, i32
  }
}

</mosaic_0001>

<llo_original>
// kernel: tpu_custom_call.1
$region0: #{tpu_custom_call.1}
  #allocation0 [shape = 'u32[]', space=smem, size = 0x4, offset = 0x4, fixed_abs, tag = 'smem constant byte address 0x4 - core index']
  #allocation1 [shape = 'u32[144,128]{1,0:T(1,128)}', space=vmem, size = 0x12000, scoped, tag = 'internal scratch']
  %s0 = inlined_call_operand.hbm [shape: bf16[8,128], index: 0, kind: input, shape index: {}]
  %s1 = inlined_call_operand.hbm [shape: bf16[3,128,128], index: 1, kind: input, shape index: {}]
  %s2 = inlined_call_operand.vmem [shape: f32[3,1,128], index: 2, kind: input, shape index: {}]
  %s3 = inlined_call_operand.hbm [shape: f32[8,128], index: 3, kind: output, shape index: {}]
  %s4 = sld [smem:[#allocation0]]
  $region30: #{tpu_custom_call.1} parent=0
    _
  %s6 = ssub.s32 1, %s4
  %s7 = scalar_select 0, %s6, %s4
  $region1: #{tpu_custom_call.1} parent=0
    #allocation2 [shape = 'u8[2048]{0}', space=vmem, size = 0x800, scoped, tag = 'input window, operand 0, single buffered']
    #allocation3 [shape = 's32[1]{0}', space=sflag, size = 0x4, scoped, tag = 'scoped memory for tpu_custom_call.1']
    #allocation4 [shape = 's32[1]{0}', space=sflag, size = 0x4, scoped, tag = 'scoped memory for tpu_custom_call.1']
    #allocation5 [shape = 'u8[98304]{0}', space=vmem, size = 0x18000, scoped, tag = 'input window, operand 1, single buffered']
    #allocation6 [shape = 's32[1]{0}', space=sflag, size = 0x4, scoped, tag = 'scoped memory for tpu_custom_call.1']
    #allocation7 [shape = 'u8[4096]{0}', space=vmem, size = 0x1000, scoped, tag = 'output window, operand 0, single buffered']
    %8 = vsyncpa [#allocation3], 0
    %9 = vsyncpa [#allocation6], 0
    %10 = vsyncpa [#allocation4], 0
    // Predicated region
    $region2: #{tpu_custom_call.1} parent=1 // pred_check
      _
    $region3: #{tpu_custom_call.1} parent=1 // pred_check_branch
      %12 = sbr.rel (0) target = $region5
    $region4: #{tpu_custom_call.1} parent=1 // pred_region
      %s14 = ssub.s32 64, 64
      %15 = vsyncadd [#allocation3], %s14
      %s17 = sshll.u32 [#allocation2], 4
      %s18 = int_to_ptr.vmem [resolvable:$true] %s17
      %20 = dma.hbm_to_vmem [thread:$0]  %s0, 64, %s18, [#allocation3]
    $region5: #{tpu_custom_call.1} parent=1 // pred_fallthru
      _
    // Predicated region
    $region6: #{tpu_custom_call.1} parent=1 // pred_check
      _
    $region7: #{tpu_custom_call.1} parent=1 // pred_check_branch
      %22 = sbr.rel (0) target = $region9
    $region8: #{tpu_custom_call.1} parent=1 // pred_region
      %s24 = ssub.s32 3072, 3072
      %25 = vsyncadd [#allocation6], %s24
      %s26 = sshll.u32 [#allocation5], 4
      %s27 = int_to_ptr.vmem [resolvable:$true] %s26
      %32 = dma.hbm_to_vmem [thread:$0]  %s1, 3072, %s27, [#allocation6], 64, 64, 4
    $region9: #{tpu_custom_call.1} parent=1 // pred_fallthru
      _
    // Predicated region
    $region10: #{tpu_custom_call.1} parent=1 // pred_check
      _
    $region11: #{tpu_custom_call.1} parent=1 // pred_check_branch
      %34 = sbr.rel (0) target = $region13
    $region12: #{tpu_custom_call.1} parent=1 // pred_region
      _
    $region13: #{tpu_custom_call.1} parent=1 // pred_fallthru
      _
    // Predicated region
    $region14: #{tpu_custom_call.1} parent=1 // pred_check
      _
    $region15: #{tpu_custom_call.1} parent=1 // pred_check_branch
      %36 = sbr.rel (0) target = $region17
    $region16: #{tpu_custom_call.1} parent=1 // pred_region
      %37 = dma.done [#allocation3], 64
    $region17: #{tpu_custom_call.1} parent=1 // pred_fallthru
      _
    // Predicated region
    $region18: #{tpu_custom_call.1} parent=1 // pred_check
      _
    $region19: #{tpu_custom_call.1} parent=1 // pred_check_branch
      %39 = sbr.rel (0) target = $region21
    $region20: #{tpu_custom_call.1} parent=1 // pred_region
      %40 = dma.done [#allocation6], 3072
    $region21: #{tpu_custom_call.1} parent=1 // pred_fallthru
      _
    %v42 = vld [vmem:[#allocation2] sm:$0xf]
    %v43 = vld [vmem:[#allocation5] sm:$0xf]
    %v44 = vld [vmem:[#allocation5 + $0x4] sm:$0xf]
    %v45 = vld [vmem:[#allocation5 + $0x8] sm:$0xf]
    %v46 = vld [vmem:[#allocation5 + $0xc] sm:$0xf]
    %v47 = vld [vmem:[#allocation5 + $0x10] sm:$0xf]
    %v48 = vld [vmem:[#allocation5 + $0x14] sm:$0xf]
    %v49 = vld [vmem:[#allocation5 + $0x18] sm:$0xf]
    %v50 = vld [vmem:[#allocation5 + $0x1c] sm:$0xf]
    %v51 = vld [vmem:[#allocation5 + $0x20] sm:$0xf]
    %v52 = vld [vmem:[#allocation5 + $0x24] sm:$0xf]
    %v53 = vld [vmem:[#allocation5 + $0x28] sm:$0xf]
    %v54 = vld [vmem:[#allocation5 + $0x2c] sm:$0xf]
    %v55 = vld [vmem:[#allocation5 + $0x30] sm:$0xf]
    %v56 = vld [vmem:[#allocation5 + $0x34] sm:$0xf]
    %v57 = vld [vmem:[#allocation5 + $0x38] sm:$0xf]
    %v58 = vld [vmem:[#allocation5 + $0x3c] sm:$0xf]
    %v59 = vld [vmem:[%s2] sm:$0x1]
    %v61 = vlaneseq
    %v62 = vshrl.u32 %v61, 7
    %v63 = vsub.s32 0, %v62
    %v64 = vrot.slane %v59, %v63
    %v82 = vunpack.c.l.b16 %v43
    %v83 = vunpack.c.l.b16 %v44
    %v84 = vunpack.c.l.b16 %v45
    %v85 = vunpack.c.l.b16 %v46
    %v86 = vunpack.c.l.b16 %v47
    %v87 = vunpack.c.l.b16 %v48
    %v88 = vunpack.c.l.b16 %v49
    %v89 = vunpack.c.l.b16 %v50
    %v90 = vunpack.c.l.b16 %v51
    %v91 = vunpack.c.l.b16 %v52
    %v92 = vunpack.c.l.b16 %v53
    %v93 = vunpack.c.l.b16 %v54
    %v94 = vunpack.c.l.b16 %v55
    %v95 = vunpack.c.l.b16 %v56
    %v96 = vunpack.c.l.b16 %v57
    %v97 = vunpack.c.l.b16 %v58
    %v98 = vpack.c.b16 %v83, %v82
    %v99 = vpack.c.b16 %v85, %v84
    %v100 = vpack.c.b16 %v87, %v86
    %v101 = vpack.c.b16 %v89, %v88
    %v102 = vpack.c.b16 %v91, %v90
    %v103 = vpack.c.b16 %v93, %v92
    %v104 = vpack.c.b16 %v95, %v94
    %v105 = vpack.c.b16 %v97, %v96
    %114 = vmatprep.subr.bf16.mxu0 0
    %115 = vmatpush1.bf16.msra.mxu0 %v98
    %116 = vmatprep.subr.bf16.mxu0 0
    %117 = vmatpush1.bf16.msra.mxu0 %v99
    %118 = vmatprep.subr.bf16.mxu0 0
    %119 = vmatpush1.bf16.msra.mxu0 %v100
    %120 = vmatprep.subr.bf16.mxu0 0
    %121 = vmatpush1.bf16.msra.mxu0 %v101
    %122 = vmatprep.subr.bf16.mxu0 0
    %123 = vmatpush1.bf16.msra.mxu0 %v102
    %124 = vmatprep.subr.bf16.mxu0 0
    %125 = vmatpush1.bf16.msra.mxu0 %v103
    %126 = vmatprep.subr.bf16.mxu0 0
    %127 = vmatpush1.bf16.msra.mxu0 %v104
    %128 = vmatprep.subr.bf16.mxu0 0
    %129 = vmatpush1.bf16.msra.mxu0 %v105
    %130 = vmatprep.subr.bf16.mxu0 0
    %131 = vmatpush1.bf16.msra.mxu0 0
    %132 = vmatprep.subr.bf16.mxu0 0
    %133 = vmatpush1.bf16.msra.mxu0 0
    %134 = vmatprep.subr.bf16.mxu0 0
    %135 = vmatpush1.bf16.msra.mxu0 0
    %136 = vmatprep.subr.bf16.mxu0 0
    %137 = vmatpush1.bf16.msra.mxu0 0
    %138 = vmatprep.subr.bf16.mxu0 0
    %139 = vmatpush1.bf16.msra.mxu0 0
    %140 = vmatprep.subr.bf16.mxu0 0
    %141 = vmatpush1.bf16.msra.mxu0 0
    %142 = vmatprep.subr.bf16.mxu0 0
    %143 = vmatpush1.bf16.msra.mxu0 0
    %144 = vmatprep.subr.bf16.mxu0 0
    %145 = vmatpush1.bf16.msra.mxu0 0
    %146 = vmatprep.mubr.bf16.mxu0 0
    %147 = vmatmul.mubr.bf16.gmra.mrb[0].mxu0 %v42
    %v148 = vpop.f32.mrb[0].mxu0
    %v149 = vadd.f32 %v64, %v148
    %v150 = vpop.f32.mrb[0].mxu0
    %v151 = vpop.f32.mrb[0].mxu0
    %v152 = vpop.f32.mrb[0].mxu0
    %153 = vdwg.mxu0
    %v154 = vmul.f32 %v149, %v149
    %v155 = vmul.f32 %v149, %v154
    %v156 = vmul.f32 %v155, 0.044715
    %v157 = vadd.f32 %v149, %v156
    %v158 = vmul.f32 %v157, 0.7978846
    %v159 = vtanh.pop %v158
    %v160 = vadd.f32 %v159, 1.0
    %v161 = vmul.f32 %v160, 0.5
    %v162 = vmul.f32 %v149, %v161
    %v163 = vpack.c.bf16 %v162, %v162
    %s164 = scalar_lea.vmem [#allocation5], 64
    %v165 = vld [vmem:[%s164] sm:$0xf]
    %v166 = vld [vmem:[%s164 + $0x4] sm:$0xf]
    %v167 = vld [vmem:[%s164 + $0x8] sm:$0xf]
    %v168 = vld [vmem:[%s164 + $0xc] sm:$0xf]
    %v169 = vld [vmem:[%s164 + $0x10] sm:$0xf]
    %v170 = vld [vmem:[%s164 + $0x14] sm:$0xf]
    %v171 = vld [vmem:[%s164 + $0x18] sm:$0xf]
    %v172 = vld [vmem:[%s164 + $0x1c] sm:$0xf]
    %v173 = vld [vmem:[%s164 + $0x20] sm:$0xf]
    %v174 = vld [vmem:[%s164 + $0x24] sm:$0xf]
    %v175 = vld [vmem:[%s164 + $0x28] sm:$0xf]
    %v176 = vld [vmem:[%s164 + $0x2c] sm:$0xf]
    %v177 = vld [vmem:[%s164 + $0x30] sm:$0xf]
    %v178 = vld [vmem:[%s164 + $0x34] sm:$0xf]
    %v179 = vld [vmem:[%s164 + $0x38] sm:$0xf]
    %v180 = vld [vmem:[%s164 + $0x3c] sm:$0xf]
    %s181 = scalar_lea.vmem %s2, 1
    %v182 = vld [vmem:[%s181] sm:$0x1]
    %v184 = vlaneseq
    %v185 = vshrl.u32 %v184, 7
    %v186 = vsub.s32 0, %v185
    %v187 = vrot.slane %v182, %v186
    %v205 = vunpack.c.l.b16 %v165
    %v206 = vunpack.c.l.b16 %v166
    %v207 = vunpack.c.l.b16 %v167
    %v208 = vunpack.c.l.b16 %v168
    %v209 = vunpack.c.l.b16 %v169
    %v210 = vunpack.c.l.b16 %v170
    %v211 = vunpack.c.l.b16 %v171
    %v212 = vunpack.c.l.b16 %v172
    %v213 = vunpack.c.l.b16 %v173
    %v214 = vunpack.c.l.b16 %v174
    %v215 = vunpack.c.l.b16 %v175
    %v216 = vunpack.c.l.b16 %v176
    %v217 = vunpack.c.l.b16 %v177
    %v218 = vunpack.c.l.b16 %v178
    %v219 = vunpack.c.l.b16 %v179
    %v220 = vunpack.c.l.b16 %v180
    %v221 = vpack.c.b16 %v206, %v205
    %v222 = vpack.c.b16 %v208, %v207
    %v223 = vpack.c.b16 %v210, %v209
    %v224 = vpack.c.b16 %v212, %v211
    %v225 = vpack.c.b16 %v214, %v213
    %v226 = vpack.c.b16 %v216, %v215
    %v227 = vpack.c.b16 %v218, %v217
    %v228 = vpack.c.b16 %v220, %v219
    %237 = vmatprep.subr.bf16.mxu0 0
    %238 = vmatpush1.bf16.msra.mxu0 %v221
    %239 = vmatprep.subr.bf16.mxu0 0
    %240 = vmatpush1.bf16.msra.mxu0 %v222
    %241 = vmatprep.subr.bf16.mxu0 0
    %242 = vmatpush1.bf16.msra.mxu0 %v223
    %243 = vmatprep.subr.bf16.mxu0 0
    %244 = vmatpush1.bf16.msra.mxu0 %v224
    %245 = vmatprep.subr.bf16.mxu0 0
    %246 = vmatpush1.bf16.msra.mxu0 %v225
    %247 = vmatprep.subr.bf16.mxu0 0
    %248 = vmatpush1.bf16.msra.mxu0 %v226
    %249 = vmatprep.subr.bf16.mxu0 0
    %250 = vmatpush1.bf16.msra.mxu0 %v227
    %251 = vmatprep.subr.bf16.mxu0 0
    %252 = vmatpush1.bf16.msra.mxu0 %v228
    %253 = vmatprep.subr.bf16.mxu0 0
    %254 = vmatpush1.bf16.msra.mxu0 0
    %255 = vmatprep.subr.bf16.mxu0 0
    %256 = vmatpush1.bf16.msra.mxu0 0
    %257 = vmatprep.subr.bf16.mxu0 0
    %258 = vmatpush1.bf16.msra.mxu0 0
    %259 = vmatprep.subr.bf16.mxu0 0
    %260 = vmatpush1.bf16.msra.mxu0 0
    %261 = vmatprep.subr.bf16.mxu0 0
    %262 = vmatpush1.bf16.msra.mxu0 0
    %263 = vmatprep.subr.bf16.mxu0 0
    %264 = vmatpush1.bf16.msra.mxu0 0
    %265 = vmatprep.subr.bf16.mxu0 0
    %266 = vmatpush1.bf16.msra.mxu0 0
    %267 = vmatprep.subr.bf16.mxu0 0
    %268 = vmatpush1.bf16.msra.mxu0 0
    %269 = vmatprep.mubr.bf16.mxu0 0
    %270 = vmatmul.mubr.bf16.gmra.mrb[0].mxu0 %v163
    %v271 = vpop.f32.mrb[0].mxu0
    %v272 = vadd.f32 %v187, %v271
    %v273 = vpop.f32.mrb[0].mxu0
    %v274 = vpop.f32.mrb[0].mxu0
    %v275 = vpop.f32.mrb[0].mxu0
    %276 = vdwg.mxu0
    %v277 = vmul.f32 %v272, %v272
    %v278 = vmul.f32 %v272, %v277
    %v279 = vmul.f32 %v278, 0.044715
    %v280 = vadd.f32 %v272, %v279
    %v281 = vmul.f32 %v280, 0.7978846
    %v282 = vtanh.pop %v281
    %v283 = vadd.f32 %v282, 1.0
    %v284 = vmul.f32 %v283, 0.5
    %v285 = vmul.f32 %v272, %v284
    %v286 = vpack.c.bf16 %v285, %v285
    %s287 = scalar_lea.vmem [#allocation5], 128
    %v288 = vld [vmem:[%s287] sm:$0xf]
    %v289 = vld [vmem:[%s287 + $0x4] sm:$0xf]
    %v290 = vld [vmem:[%s287 + $0x8] sm:$0xf]
    %v291 = vld [vmem:[%s287 + $0xc] sm:$0xf]
    %v292 = vld [vmem:[%s287 + $0x10] sm:$0xf]
    %v293 = vld [vmem:[%s287 + $0x14] sm:$0xf]
    %v294 = vld [vmem:[%s287 + $0x18] sm:$0xf]
    %v295 = vld [vmem:[%s287 + $0x1c] sm:$0xf]
    %v296 = vld [vmem:[%s287 + $0x20] sm:$0xf]
    %v297 = vld [vmem:[%s287 + $0x24] sm:$0xf]
    %v298 = vld [vmem:[%s287 + $0x28] sm:$0xf]
    %v299 = vld [vmem:[%s287 + $0x2c] sm:$0xf]
    %v300 = vld [vmem:[%s287 + $0x30] sm:$0xf]
    %v301 = vld [vmem:[%s287 + $0x34] sm:$0xf]
    %v302 = vld [vmem:[%s287 + $0x38] sm:$0xf]
    %v303 = vld [vmem:[%s287 + $0x3c] sm:$0xf]
    %s304 = scalar_lea.vmem %s2, 2
    %v305 = vld [vmem:[%s304] sm:$0x1]
    %v307 = vlaneseq
    %v308 = vshrl.u32 %v307, 7
    %v309 = vsub.s32 0, %v308
    %v310 = vrot.slane %v305, %v309
    %v328 = vunpack.c.l.b16 %v288
    %v329 = vunpack.c.l.b16 %v289
    %v330 = vunpack.c.l.b16 %v290
    %v331 = vunpack.c.l.b16 %v291
    %v332 = vunpack.c.l.b16 %v292
    %v333 = vunpack.c.l.b16 %v293
    %v334 = vunpack.c.l.b16 %v294
    %v335 = vunpack.c.l.b16 %v295
    %v336 = vunpack.c.l.b16 %v296
    %v337 = vunpack.c.l.b16 %v297
    %v338 = vunpack.c.l.b16 %v298
    %v339 = vunpack.c.l.b16 %v299
    %v340 = vunpack.c.l.b16 %v300
    %v341 = vunpack.c.l.b16 %v301
    %v342 = vunpack.c.l.b16 %v302
    %v343 = vunpack.c.l.b16 %v303
    %v344 = vpack.c.b16 %v329, %v328
    %v345 = vpack.c.b16 %v331, %v330
    %v346 = vpack.c.b16 %v333, %v332
    %v347 = vpack.c.b16 %v335, %v334
    %v348 = vpack.c.b16 %v337, %v336
    %v349 = vpack.c.b16 %v339, %v338
    %v350 = vpack.c.b16 %v341, %v340
    %v351 = vpack.c.b16 %v343, %v342
    %360 = vmatprep.subr.bf16.mxu0 0
    %361 = vmatpush1.bf16.msra.mxu0 %v344
    %362 = vmatprep.subr.bf16.mxu0 0
    %363 = vmatpush1.bf16.msra.mxu0 %v345
    %364 = vmatprep.subr.bf16.mxu0 0
    %365 = vmatpush1.bf16.msra.mxu0 %v346
    %366 = vmatprep.subr.bf16.mxu0 0
    %367 = vmatpush1.bf16.msra.mxu0 %v347
    %368 = vmatprep.subr.bf16.mxu0 0
    %369 = vmatpush1.bf16.msra.mxu0 %v348
    %370 = vmatprep.subr.bf16.mxu0 0
    %371 = vmatpush1.bf16.msra.mxu0 %v349
    %372 = vmatprep.subr.bf16.mxu0 0
    %373 = vmatpush1.bf16.msra.mxu0 %v350
    %374 = vmatprep.subr.bf16.mxu0 0
    %375 = vmatpush1.bf16.msra.mxu0 %v351
    %376 = vmatprep.subr.bf16.mxu0 0
    %377 = vmatpush1.bf16.msra.mxu0 0
    %378 = vmatprep.subr.bf16.mxu0 0
    %379 = vmatpush1.bf16.msra.mxu0 0
    %380 = vmatprep.subr.bf16.mxu0 0
    %381 = vmatpush1.bf16.msra.mxu0 0
    %382 = vmatprep.subr.bf16.mxu0 0
    %383 = vmatpush1.bf16.msra.mxu0 0
    %384 = vmatprep.subr.bf16.mxu0 0
    %385 = vmatpush1.bf16.msra.mxu0 0
    %386 = vmatprep.subr.bf16.mxu0 0
    %387 = vmatpush1.bf16.msra.mxu0 0
    %388 = vmatprep.subr.bf16.mxu0 0
    %389 = vmatpush1.bf16.msra.mxu0 0
    %390 = vmatprep.subr.bf16.mxu0 0
    %391 = vmatpush1.bf16.msra.mxu0 0
    %392 = vmatprep.mubr.bf16.mxu0 0
    %393 = vmatmul.mubr.bf16.gmra.mrb[0].mxu0 %v286
    %v394 = vpop.f32.mrb[0].mxu0
    %v395 = vadd.f32 %v310, %v394
    %v396 = vpop.f32.mrb[0].mxu0
    %v397 = vpop.f32.mrb[0].mxu0
    %v398 = vpop.f32.mrb[0].mxu0
    %399 = vdwg.mxu0
    %400 = vst [vmem:[#allocation7] sm:$0xff] %v395
    // Predicated region
    $region22: #{tpu_custom_call.1} parent=1 // pred_check
      _
    $region23: #{tpu_custom_call.1} parent=1 // pred_check_branch
      %402 = sbr.rel (0) target = $region25
    $region24: #{tpu_custom_call.1} parent=1 // pred_region
      %s404 = ssub.s32 128, 128
      %405 = vsyncadd [#allocation4], %s404
      %s407 = sshll.u32 [#allocation7], 4
      %s408 = int_to_ptr.vmem [resolvable:$true] %s407
      %410 = dma.vmem_to_hbm [thread:$0]  %s408, 128, %s3, [#allocation4]
    $region25: #{tpu_custom_call.1} parent=1 // pred_fallthru
      _
    // Predicated region
    $region26: #{tpu_custom_call.1} parent=1 // pred_check
      _
    $region27: #{tpu_custom_call.1} parent=1 // pred_check_branch
      %412 = sbr.rel (0) target = $region29
    $region28: #{tpu_custom_call.1} parent=1 // pred_region
      %413 = dma.done [#allocation4], 128
    $region29: #{tpu_custom_call.1} parent=1 // pred_fallthru
      _
    %414 = vsyncpa [#allocation3], 1
    %415 = vsyncpa [#allocation6], 1
    %416 = vsyncpa [#allocation4], 1

</llo_original>
